<compile_context>
chip_gen: v7x
topology: tpu7x:2x2x1
jax: 0.10.0
libtpu: 0.0.40
codegen_flags: <defaults>
</compile_context>

<pallas_src>
import functools

import jax
import jax.numpy as jnp
from jax.experimental import pallas as pl
from jax.experimental.pallas import tpu as pltpu


def _gcn_fused_kernel(x_ref, a_ref, w1_ref, w2_ref, o_ref):
    """out = A @ (relu(A @ (x @ W1)) @ W2), everything resident in VMEM."""
    cdt = jnp.bfloat16                       # MXU-native operand dtype

    # Cast once, in-kernel (cheap VPU work, no extra HBM traffic).
    x = x_ref[...].astype(cdt)
    a = a_ref[...].astype(cdt)               # (N, N): loaded once, used twice
    w1 = w1_ref[...].astype(cdt)
    w2 = w2_ref[...].astype(cdt)

    # ---- layer 1: support = x @ W1 ; h = relu(A_norm @ support) ------------
    s1 = jnp.dot(x, w1, preferred_element_type=jnp.float32)
    h = jnp.dot(a, s1.astype(cdt), preferred_element_type=jnp.float32)
    h = jnp.maximum(h, 0.0)

    # TODO(synk): F.dropout(p=0.5, training=self.training) is identity in eval
    # mode; training-mode dropout would use pltpu.prng_seed / prng_random_bits.

    # ---- layer 2: support = h @ W2 ; out = A_norm @ support ----------------
    s2 = jnp.dot(h.astype(cdt), w2, preferred_element_type=jnp.float32)
    out = jnp.dot(a, s2.astype(cdt), preferred_element_type=jnp.float32)

    o_ref[...] = out.astype(o_ref.dtype)


@functools.partial(jax.jit, static_argnames=("out_dtype",))
def gcn_forward(x, A_norm, W1, W2, *, out_dtype=jnp.float32):
    """Pallas implementation of GCN.forward (eval mode), fully fused in VMEM."""
    n_nodes, nfeat = x.shape
    assert A_norm.shape == (n_nodes, n_nodes), A_norm.shape
    nfeat_w, nhid = W1.shape
    nhid_w, nclass = W2.shape
    assert nfeat_w == nfeat and nhid_w == nhid, (x.shape, W1.shape, W2.shape)

    # Whole working set must fit comfortably in VMEM on every generation
    # (v7x = 64 MiB physical, 32 MiB scoped default).
    # TODO(synk): for graphs that outgrow VMEM, tile the node/neighbor dims
    # with a pl.when-initialized f32 VMEM accumulator instead of this fused
    # single-block kernel.
    f32_bytes = 4
    vmem_bytes = f32_bytes * (n_nodes * nfeat + n_nodes * n_nodes
                              + nfeat * nhid + nhid * nclass
                              + n_nodes * nclass)
    assert vmem_bytes < 24 * 1024 * 1024, "graph too large for fused VMEM kernel"

    return pl.pallas_call(
        _gcn_fused_kernel,
        out_shape=jax.ShapeDtypeStruct((n_nodes, nclass), out_dtype),
        grid_spec=pl.GridSpec(
            grid=(1,),  # single shot: nothing to pipeline at this size
            in_specs=[
                pl.BlockSpec((n_nodes, nfeat), lambda i: (0, 0)),    # x
                pl.BlockSpec((n_nodes, n_nodes), lambda i: (0, 0)),  # A_norm
                pl.BlockSpec((nfeat, nhid), lambda i: (0, 0)),       # W1
                pl.BlockSpec((nhid, nclass), lambda i: (0, 0)),      # W2
            ],
            out_specs=pl.BlockSpec((n_nodes, nclass), lambda i: (0, 0)),
        ),
        compiler_params=pltpu.CompilerParams(
            dimension_semantics=("arbitrary",),
        ),
    )(x, A_norm, W1, W2)


def xavier_uniform(key, in_features, out_features, dtype=jnp.float32):
    bound = jnp.sqrt(6.0 / (in_features + out_features))
    return jax.random.uniform(key, (in_features, out_features),
                              dtype=dtype, minval=-bound, maxval=bound)


if __name__ == "__main__":
    key = jax.random.PRNGKey(0)
    k_x, k_adj, k_w1, k_w2 = jax.random.split(key, 4)

    N_NODES, NFEAT, NHID, NCLASS = 128, 64, 32, 16

    # Node features.
    x = jax.random.normal(k_x, (N_NODES, NFEAT), dtype=jnp.float32)

    # Deterministic random graph -> symmetrically normalized adjacency + self-loops.
    adj = (jax.random.uniform(k_adj, (N_NODES, N_NODES)) < 0.1).astype(jnp.float32)
    adj = jnp.maximum(adj, adj.T) + jnp.eye(N_NODES, dtype=jnp.float32)
    deg_inv_sqrt = 1.0 / jnp.sqrt(adj.sum(axis=1))
    A_norm = adj * deg_inv_sqrt[:, None] * deg_inv_sqrt[None, :]

    # Parameters (xavier_uniform_, as in GCNLayer.reset_parameters).
    W1 = xavier_uniform(k_w1, NFEAT, NHID)
    W2 = xavier_uniform(k_w2, NHID, NCLASS)

    out = jax.block_until_ready(gcn_forward(x, A_norm, W1, W2))
    assert out.shape == (N_NODES, NCLASS)
    assert out.dtype == jnp.float32

    # Tight check against a plain-JAX reference that mimics the kernel's
    # bf16-operand / f32-accumulation arithmetic exactly.
    def ref_mixed(x, A, W1, W2, dt=jnp.bfloat16):
        xc, ac, w1c, w2c = (v.astype(dt) for v in (x, A, W1, W2))
        s1 = jnp.dot(xc, w1c, preferred_element_type=jnp.float32)
        h = jnp.maximum(
            jnp.dot(ac, s1.astype(dt), preferred_element_type=jnp.float32), 0.0)
        s2 = jnp.dot(h.astype(dt), w2c, preferred_element_type=jnp.float32)
        return jnp.dot(ac, s2.astype(dt), preferred_element_type=jnp.float32)

    ref_bf16 = ref_mixed(x, A_norm, W1, W2)
    assert jnp.allclose(out, ref_bf16, atol=5e-3, rtol=5e-3)

    # Loose sanity check against the full-f32 reference (bf16 operands cost
    # ~1% relative error, so a tight f32 tolerance is intentionally not used).
    ref_f32 = A_norm @ (jnp.maximum(A_norm @ (x @ W1), 0.0) @ W2)
    assert jnp.allclose(out, ref_f32, atol=1e-1, rtol=5e-2)

    print("KERNEL_OK")
</pallas_src>

<mosaic_0001>
module attributes {stable_mosaic.version = 11 : i64} {
  func.func @_gcn_fused_kernel(%arg0: i32, %arg1: memref<128x64xf32, #tpu.memory_space<vmem>>, %arg2: memref<128x128xf32, #tpu.memory_space<vmem>>, %arg3: memref<64x32xf32, #tpu.memory_space<vmem>>, %arg4: memref<32x16xf32, #tpu.memory_space<vmem>>, %arg5: memref<128x16xf32, #tpu.memory_space<vmem>>) attributes {dimension_semantics = [#tpu.dimension_semantics<arbitrary>], iteration_bounds = array<i64: 1>, scalar_prefetch = 0 : i64, scratch_operands = 0 : i64, tpu.core_type = #tpu.core_type<tc>, window_params = [{pipeline_mode = #tpu.pipeline_mode<synchronous>, transform_indices = @transform_0, window_bounds = array<i64: 128, 64>}, {pipeline_mode = #tpu.pipeline_mode<synchronous>, transform_indices = @transform_1, window_bounds = array<i64: 128, 128>}, {pipeline_mode = #tpu.pipeline_mode<synchronous>, transform_indices = @transform_2, window_bounds = array<i64: 64, 32>}, {pipeline_mode = #tpu.pipeline_mode<synchronous>, transform_indices = @transform_3, window_bounds = array<i64: 32, 16>}, {pipeline_mode = #tpu.pipeline_mode<synchronous>, transform_indices = @transform_4, window_bounds = array<i64: 128, 16>}]} {
    %c0 = arith.constant 0 : index
    %c0_0 = arith.constant 0 : index
    %0 = vector.load %arg1[%c0, %c0_0] : memref<128x64xf32, #tpu.memory_space<vmem>>, vector<128x64xf32>
    %1 = arith.truncf %0 : vector<128x64xf32> to vector<128x64xbf16>
    %c0_1 = arith.constant 0 : index
    %c0_2 = arith.constant 0 : index
    %2 = vector.load %arg2[%c0_1, %c0_2] : memref<128x128xf32, #tpu.memory_space<vmem>>, vector<128x128xf32>
    %3 = arith.truncf %2 : vector<128x128xf32> to vector<128x128xbf16>
    %c0_3 = arith.constant 0 : index
    %c0_4 = arith.constant 0 : index
    %4 = vector.load %arg3[%c0_3, %c0_4] : memref<64x32xf32, #tpu.memory_space<vmem>>, vector<64x32xf32>
    %5 = arith.truncf %4 : vector<64x32xf32> to vector<64x32xbf16>
    %c0_5 = arith.constant 0 : index
    %c0_6 = arith.constant 0 : index
    %6 = vector.load %arg4[%c0_5, %c0_6] : memref<32x16xf32, #tpu.memory_space<vmem>>, vector<32x16xf32>
    %7 = arith.truncf %6 : vector<32x16xf32> to vector<32x16xbf16>
    %cst = arith.constant dense<0.000000e+00> : vector<128x32xf32>
    %8 = tpu.matmul %1, %5, %cst {dimension_numbers = #tpu.dot_dimension_numbers<[1], [0], [0], [1], [0, 0, 1, 1], [], []>} : vector<128x64xbf16>, vector<64x32xbf16>, vector<128x32xf32> -> vector<128x32xf32>
    %9 = arith.truncf %8 : vector<128x32xf32> to vector<128x32xbf16>
    %cst_7 = arith.constant dense<0.000000e+00> : vector<128x32xf32>
    %10 = tpu.matmul %3, %9, %cst_7 {dimension_numbers = #tpu.dot_dimension_numbers<[1], [0], [0], [1], [0, 0, 1, 1], [], []>} : vector<128x128xbf16>, vector<128x32xbf16>, vector<128x32xf32> -> vector<128x32xf32>
    %cst_8 = arith.constant 0.000000e+00 : f32
    %11 = vector.broadcast %cst_8 : f32 to vector<128x32xf32>
    %12 = arith.maximumf %10, %11 : vector<128x32xf32>
    %13 = arith.truncf %12 : vector<128x32xf32> to vector<128x32xbf16>
    %cst_9 = arith.constant dense<0.000000e+00> : vector<128x16xf32>
    %14 = tpu.matmul %13, %7, %cst_9 {dimension_numbers = #tpu.dot_dimension_numbers<[1], [0], [0], [1], [0, 0, 1, 1], [], []>} : vector<128x32xbf16>, vector<32x16xbf16>, vector<128x16xf32> -> vector<128x16xf32>
    %15 = arith.truncf %14 : vector<128x16xf32> to vector<128x16xbf16>
    %cst_10 = arith.constant dense<0.000000e+00> : vector<128x16xf32>
    %16 = tpu.matmul %3, %15, %cst_10 {dimension_numbers = #tpu.dot_dimension_numbers<[1], [0], [0], [1], [0, 0, 1, 1], [], []>} : vector<128x128xbf16>, vector<128x16xbf16>, vector<128x16xf32> -> vector<128x16xf32>
    %c0_11 = arith.constant 0 : index
    %c0_12 = arith.constant 0 : index
    %17 = vector.load %arg5[%c0_11, %c0_12] : memref<128x16xf32, #tpu.memory_space<vmem>>, vector<128x16xf32>
    tpu.vector_store %arg5[%c0_11, %c0_12], %16 {strides = array<i32>} : memref<128x16xf32, #tpu.memory_space<vmem>>, vector<128x16xf32>,
    return
  }
  func.func @transform_0(%arg0: i32) -> (i32, i32) {
    %c0_i32 = arith.constant 0 : i32
    %c0_i32_0 = arith.constant 0 : i32
    %c0_i32_1 = arith.constant 0 : i32
    return %c0_i32, %c0_i32_0 : i32, i32
  }
  func.func @transform_1(%arg0: i32) -> (i32, i32) {
    %c0_i32 = arith.constant 0 : i32
    %c0_i32_0 = arith.constant 0 : i32
    %c0_i32_1 = arith.constant 0 : i32
    return %c0_i32, %c0_i32_0 : i32, i32
  }
  func.func @transform_2(%arg0: i32) -> (i32, i32) {
    %c0_i32 = arith.constant 0 : i32
    %c0_i32_0 = arith.constant 0 : i32
    %c0_i32_1 = arith.constant 0 : i32
    return %c0_i32, %c0_i32_0 : i32, i32
  }
  func.func @transform_3(%arg0: i32) -> (i32, i32) {
    %c0_i32 = arith.constant 0 : i32
    %c0_i32_0 = arith.constant 0 : i32
    %c0_i32_1 = arith.constant 0 : i32
    return %c0_i32, %c0_i32_0 : i32, i32
  }
  func.func @transform_4(%arg0: i32) -> (i32, i32) {
    %c0_i32 = arith.constant 0 : i32
    %c0_i32_0 = arith.constant 0 : i32
    %c0_i32_1 = arith.constant 0 : i32
    return %c0_i32, %c0_i32_0 : i32, i32
  }
}

</mosaic_0001>

<llo_original>
// kernel: gcn_forward.1
$region0: #{gcn_forward.1}
  #allocation0 [shape = 'u32[]', space=smem, size = 0x4, offset = 0x4, fixed_abs, tag = 'smem constant byte address 0x4 - core index']
  #allocation1 [shape = 'u32[144,128]{1,0:T(1,128)}', space=vmem, size = 0x12000, scoped, tag = 'internal scratch']
  %s0 = inlined_call_operand.vmem [shape: f32[128,64], index: 0, kind: input, shape index: {}]
  %s1 = inlined_call_operand.vmem [shape: f32[128,128], index: 1, kind: input, shape index: {}]
  %s2 = inlined_call_operand.vmem [shape: f32[64,32], index: 2, kind: input, shape index: {}]
  %s3 = inlined_call_operand.vmem [shape: f32[32,16], index: 3, kind: input, shape index: {}]
  %s4 = inlined_call_operand.vmem [shape: f32[128,16], index: 4, kind: output, shape index: {}]
  %s5 = sld [smem:[#allocation0]]
  $region26: #{gcn_forward.1} parent=0
    _
  %s7 = ssub.s32 1, %s5
  %s8 = scalar_select 0, %s7, %s5
  // Predicated region
  $region2: #{gcn_forward.1} parent=0 // pred_check
    _
  $region3: #{gcn_forward.1} parent=0 // pred_check_branch
    %10 = sbr.rel (0) target = $region5
  $region4: #{gcn_forward.1} parent=0 // pred_region
    _
  $region5: #{gcn_forward.1} parent=0 // pred_fallthru
    _
  // Predicated region
  $region6: #{gcn_forward.1} parent=0 // pred_check
    _
  $region7: #{gcn_forward.1} parent=0 // pred_check_branch
    %12 = sbr.rel (0) target = $region9
  $region8: #{gcn_forward.1} parent=0 // pred_region
    _
  $region9: #{gcn_forward.1} parent=0 // pred_fallthru
    _
  // Predicated region
  $region10: #{gcn_forward.1} parent=0 // pred_check
    _
  $region11: #{gcn_forward.1} parent=0 // pred_check_branch
    %14 = sbr.rel (0) target = $region13
  $region12: #{gcn_forward.1} parent=0 // pred_region
    _
  $region13: #{gcn_forward.1} parent=0 // pred_fallthru
    _
  // Predicated region
  $region14: #{gcn_forward.1} parent=0 // pred_check
    _
  $region15: #{gcn_forward.1} parent=0 // pred_check_branch
    %16 = sbr.rel (0) target = $region17
  $region16: #{gcn_forward.1} parent=0 // pred_region
    _
  $region17: #{gcn_forward.1} parent=0 // pred_fallthru
    _
  %v18 = vld [vmem:[%s0] sm:$0xff]
  %v19 = vld [vmem:[%s0 + $0x8] sm:$0xff]
  %v20 = vld [vmem:[%s0 + $0x10] sm:$0xff]
  %v21 = vld [vmem:[%s0 + $0x18] sm:$0xff]
  %v22 = vld [vmem:[%s0 + $0x20] sm:$0xff]
  %v23 = vld [vmem:[%s0 + $0x28] sm:$0xff]
  %v24 = vld [vmem:[%s0 + $0x30] sm:$0xff]
  %v25 = vld [vmem:[%s0 + $0x38] sm:$0xff]
  %v26 = vld [vmem:[%s0 + $0x40] sm:$0xff]
  %v27 = vld [vmem:[%s0 + $0x48] sm:$0xff]
  %v28 = vld [vmem:[%s0 + $0x50] sm:$0xff]
  %v29 = vld [vmem:[%s0 + $0x58] sm:$0xff]
  %v30 = vld [vmem:[%s0 + $0x60] sm:$0xff]
  %v31 = vld [vmem:[%s0 + $0x68] sm:$0xff]
  %v32 = vld [vmem:[%s0 + $0x70] sm:$0xff]
  %v33 = vld [vmem:[%s0 + $0x78] sm:$0xff]
  %v34 = vpack.c.bf16 %v19, %v18
  %v35 = vpack.c.bf16 %v21, %v20
  %v36 = vpack.c.bf16 %v23, %v22
  %v37 = vpack.c.bf16 %v25, %v24
  %v38 = vpack.c.bf16 %v27, %v26
  %v39 = vpack.c.bf16 %v29, %v28
  %v40 = vpack.c.bf16 %v31, %v30
  %v41 = vpack.c.bf16 %v33, %v32
  %v42 = vld [vmem:[%s1] sm:$0xff]
  %v43 = vld [vmem:[%s1 + $0x8] sm:$0xff]
  %v44 = vld [vmem:[%s1 + $0x10] sm:$0xff]
  %v45 = vld [vmem:[%s1 + $0x18] sm:$0xff]
  %v46 = vld [vmem:[%s1 + $0x20] sm:$0xff]
  %v47 = vld [vmem:[%s1 + $0x28] sm:$0xff]
  %v48 = vld [vmem:[%s1 + $0x30] sm:$0xff]
  %v49 = vld [vmem:[%s1 + $0x38] sm:$0xff]
  %v50 = vld [vmem:[%s1 + $0x40] sm:$0xff]
  %v51 = vld [vmem:[%s1 + $0x48] sm:$0xff]
  %v52 = vld [vmem:[%s1 + $0x50] sm:$0xff]
  %v53 = vld [vmem:[%s1 + $0x58] sm:$0xff]
  %v54 = vld [vmem:[%s1 + $0x60] sm:$0xff]
  %v55 = vld [vmem:[%s1 + $0x68] sm:$0xff]
  %v56 = vld [vmem:[%s1 + $0x70] sm:$0xff]
  %v57 = vld [vmem:[%s1 + $0x78] sm:$0xff]
  %v58 = vpack.c.bf16 %v43, %v42
  %v59 = vpack.c.bf16 %v45, %v44
  %v60 = vpack.c.bf16 %v47, %v46
  %v61 = vpack.c.bf16 %v49, %v48
  %v62 = vpack.c.bf16 %v51, %v50
  %v63 = vpack.c.bf16 %v53, %v52
  %v64 = vpack.c.bf16 %v55, %v54
  %v65 = vpack.c.bf16 %v57, %v56
  %v66 = vld [vmem:[%s2] sm:$0xff]
  %v67 = vld [vmem:[%s2 + $0x8] sm:$0xff]
  %v68 = vld [vmem:[%s2 + $0x10] sm:$0xff]
  %v69 = vld [vmem:[%s2 + $0x18] sm:$0xff]
  %v70 = vld [vmem:[%s2 + $0x20] sm:$0xff]
  %v71 = vld [vmem:[%s2 + $0x28] sm:$0xff]
  %v72 = vld [vmem:[%s2 + $0x30] sm:$0xff]
  %v73 = vld [vmem:[%s2 + $0x38] sm:$0xff]
  %v74 = vpack.c.bf16 %v67, %v66
  %v75 = vpack.c.bf16 %v69, %v68
  %v76 = vpack.c.bf16 %v71, %v70
  %v77 = vpack.c.bf16 %v73, %v72
  %v78 = vld [vmem:[%s3] sm:$0xff]
  %v79 = vld [vmem:[%s3 + $0x8] sm:$0xff]
  %v80 = vld [vmem:[%s3 + $0x10] sm:$0xff]
  %v81 = vld [vmem:[%s3 + $0x18] sm:$0xff]
  %v82 = vpack.c.bf16 %v79, %v78
  %v83 = vpack.c.bf16 %v81, %v80
  %vm84 = vcmask 523264
  %v86 = vsel %vm84, %v34, 0
  %v89 = vsel %vm84, %v35, 0
  %v92 = vsel %vm84, %v36, 0
  %v95 = vsel %vm84, %v37, 0
  %v98 = vsel %vm84, %v38, 0
  %v101 = vsel %vm84, %v39, 0
  %v104 = vsel %vm84, %v40, 0
  %v107 = vsel %vm84, %v41, 0
  %109 = vmatprep.subr.bf16.mxu0 0
  %110 = vmatpush1.bf16.msra.mxu0 %v74
  %111 = vmatprep.subr.bf16.mxu0 0
  %112 = vmatpush1.bf16.msra.mxu0 %v75
  %113 = vmatprep.subr.bf16.mxu0 0
  %114 = vmatpush1.bf16.msra.mxu0 %v76
  %115 = vmatprep.subr.bf16.mxu0 0
  %116 = vmatpush1.bf16.msra.mxu0 %v77
  %117 = vmatprep.subr.bf16.mxu0 0
  %118 = vmatpush1.bf16.msra.mxu0 0
  %119 = vmatprep.subr.bf16.mxu0 0
  %120 = vmatpush1.bf16.msra.mxu0 0
  %121 = vmatprep.subr.bf16.mxu0 0
  %122 = vmatpush1.bf16.msra.mxu0 0
  %123 = vmatprep.subr.bf16.mxu0 0
  %124 = vmatpush1.bf16.msra.mxu0 0
  %125 = vmatprep.subr.bf16.mxu0 0
  %126 = vmatpush1.bf16.msra.mxu0 0
  %127 = vmatprep.subr.bf16.mxu0 0
  %128 = vmatpush1.bf16.msra.mxu0 0
  %129 = vmatprep.subr.bf16.mxu0 0
  %130 = vmatpush1.bf16.msra.mxu0 0
  %131 = vmatprep.subr.bf16.mxu0 0
  %132 = vmatpush1.bf16.msra.mxu0 0
  %133 = vmatprep.subr.bf16.mxu0 0
  %134 = vmatpush1.bf16.msra.mxu0 0
  %135 = vmatprep.subr.bf16.mxu0 0
  %136 = vmatpush1.bf16.msra.mxu0 0
  %137 = vmatprep.subr.bf16.mxu0 0
  %138 = vmatpush1.bf16.msra.mxu0 0
  %139 = vmatprep.subr.bf16.mxu0 0
  %140 = vmatpush1.bf16.msra.mxu0 0
  %141 = vmatprep.mubr.bf16.mxu0 0
  %142 = vmatmul.mubr.bf16.gmra.mrb[0].mxu0 %v86
  %v143 = vpop.f32.mrb[0].mxu0
  %v144 = vadd.f32 0.0, %v143
  %v145 = vpop.f32.mrb[0].mxu0
  %v146 = vpop.f32.mrb[0].mxu0
  %v147 = vadd.f32 0.0, %v146
  %v148 = vpop.f32.mrb[0].mxu0
  %149 = vmatprep.mubr.bf16.mxu0 0
  %150 = vmatmul.mubr.bf16.gmra.mrb[0].mxu0 %v89
  %v151 = vpop.f32.mrb[0].mxu0
  %v152 = vadd.f32 0.0, %v151
  %v153 = vpop.f32.mrb[0].mxu0
  %v154 = vpop.f32.mrb[0].mxu0
  %v155 = vadd.f32 0.0, %v154
  %v156 = vpop.f32.mrb[0].mxu0
  %157 = vmatprep.mubr.bf16.mxu0 0
  %158 = vmatmul.mubr.bf16.gmra.mrb[0].mxu0 %v92
  %v159 = vpop.f32.mrb[0].mxu0
  %v160 = vadd.f32 0.0, %v159
  %v161 = vpop.f32.mrb[0].mxu0
  %v162 = vpop.f32.mrb[0].mxu0
  %v163 = vadd.f32 0.0, %v162
  %v164 = vpop.f32.mrb[0].mxu0
  %165 = vmatprep.mubr.bf16.mxu0 0
  %166 = vmatmul.mubr.bf16.gmra.mrb[0].mxu0 %v95
  %v167 = vpop.f32.mrb[0].mxu0
  %v168 = vadd.f32 0.0, %v167
  %v169 = vpop.f32.mrb[0].mxu0
  %v170 = vpop.f32.mrb[0].mxu0
  %v171 = vadd.f32 0.0, %v170
  %v172 = vpop.f32.mrb[0].mxu0
  %173 = vmatprep.mubr.bf16.mxu0 0
  %174 = vmatmul.mubr.bf16.gmra.mrb[0].mxu0 %v98
  %v175 = vpop.f32.mrb[0].mxu0
  %v176 = vadd.f32 0.0, %v175
  %v177 = vpop.f32.mrb[0].mxu0
  %v178 = vpop.f32.mrb[0].mxu0
  %v179 = vadd.f32 0.0, %v178
  %v180 = vpop.f32.mrb[0].mxu0
  %181 = vmatprep.mubr.bf16.mxu0 0
  %182 = vmatmul.mubr.bf16.gmra.mrb[0].mxu0 %v101
  %v183 = vpop.f32.mrb[0].mxu0
  %v184 = vadd.f32 0.0, %v183
  %v185 = vpop.f32.mrb[0].mxu0
  %v186 = vpop.f32.mrb[0].mxu0
  %v187 = vadd.f32 0.0, %v186
  %v188 = vpop.f32.mrb[0].mxu0
  %189 = vmatprep.mubr.bf16.mxu0 0
  %190 = vmatmul.mubr.bf16.gmra.mrb[0].mxu0 %v104
  %v191 = vpop.f32.mrb[0].mxu0
  %v192 = vadd.f32 0.0, %v191
  %v193 = vpop.f32.mrb[0].mxu0
  %v194 = vpop.f32.mrb[0].mxu0
  %v195 = vadd.f32 0.0, %v194
  %v196 = vpop.f32.mrb[0].mxu0
  %197 = vmatprep.mubr.bf16.mxu0 0
  %198 = vmatmul.mubr.bf16.gmra.mrb[0].mxu0 %v107
  %v199 = vpop.f32.mrb[0].mxu0
  %v200 = vadd.f32 0.0, %v199
  %v201 = vpop.f32.mrb[0].mxu0
  %v202 = vpop.f32.mrb[0].mxu0
  %v203 = vadd.f32 0.0, %v202
  %v204 = vpop.f32.mrb[0].mxu0
  %205 = vdwg.mxu0
  %v206 = vpack.c.bf16 %v147, %v144
  %v207 = vpack.c.bf16 %v155, %v152
  %v208 = vpack.c.bf16 %v163, %v160
  %v209 = vpack.c.bf16 %v171, %v168
  %v210 = vpack.c.bf16 %v179, %v176
  %v211 = vpack.c.bf16 %v187, %v184
  %v212 = vpack.c.bf16 %v195, %v192
  %v213 = vpack.c.bf16 %v203, %v200
  %214 = vmatprep.subr.bf16.mxu0 0
  %215 = vmatpush1.bf16.msra.mxu0 %v206
  %216 = vmatprep.subr.bf16.mxu0 0
  %217 = vmatpush1.bf16.msra.mxu0 %v207
  %218 = vmatprep.subr.bf16.mxu0 0
  %219 = vmatpush1.bf16.msra.mxu0 %v208
  %220 = vmatprep.subr.bf16.mxu0 0
  %221 = vmatpush1.bf16.msra.mxu0 %v209
  %222 = vmatprep.subr.bf16.mxu0 0
  %223 = vmatpush1.bf16.msra.mxu0 %v210
  %224 = vmatprep.subr.bf16.mxu0 0
  %225 = vmatpush1.bf16.msra.mxu0 %v211
  %226 = vmatprep.subr.bf16.mxu0 0
  %227 = vmatpush1.bf16.msra.mxu0 %v212
  %228 = vmatprep.subr.bf16.mxu0 0
  %229 = vmatpush1.bf16.msra.mxu0 %v213
  %230 = vmatprep.subr.bf16.mxu0 0
  %231 = vmatpush1.bf16.msra.mxu0 0
  %232 = vmatprep.subr.bf16.mxu0 0
  %233 = vmatpush1.bf16.msra.mxu0 0
  %234 = vmatprep.subr.bf16.mxu0 0
  %235 = vmatpush1.bf16.msra.mxu0 0
  %236 = vmatprep.subr.bf16.mxu0 0
  %237 = vmatpush1.bf16.msra.mxu0 0
  %238 = vmatprep.subr.bf16.mxu0 0
  %239 = vmatpush1.bf16.msra.mxu0 0
  %240 = vmatprep.subr.bf16.mxu0 0
  %241 = vmatpush1.bf16.msra.mxu0 0
  %242 = vmatprep.subr.bf16.mxu0 0
  %243 = vmatpush1.bf16.msra.mxu0 0
  %244 = vmatprep.subr.bf16.mxu0 0
  %245 = vmatpush1.bf16.msra.mxu0 0
  %246 = vmatprep.mubr.bf16.mxu0 0
  %247 = vmatmul.mubr.bf16.gmra.mrb[0].mxu0 %v58
  %v248 = vpop.f32.mrb[0].mxu0
  %v249 = vadd.f32 0.0, %v248
  %v250 = vpop.f32.mrb[0].mxu0
  %v251 = vpop.f32.mrb[0].mxu0
  %v252 = vadd.f32 0.0, %v251
  %v253 = vpop.f32.mrb[0].mxu0
  %254 = vmatprep.mubr.bf16.mxu0 0
  %255 = vmatmul.mubr.bf16.gmra.mrb[0].mxu0 %v59
  %v256 = vpop.f32.mrb[0].mxu0
  %v257 = vadd.f32 0.0, %v256
  %v258 = vpop.f32.mrb[0].mxu0
  %v259 = vpop.f32.mrb[0].mxu0
  %v260 = vadd.f32 0.0, %v259
  %v261 = vpop.f32.mrb[0].mxu0
  %262 = vmatprep.mubr.bf16.mxu0 0
  %263 = vmatmul.mubr.bf16.gmra.mrb[0].mxu0 %v60
  %v264 = vpop.f32.mrb[0].mxu0
  %v265 = vadd.f32 0.0, %v264
  %v266 = vpop.f32.mrb[0].mxu0
  %v267 = vpop.f32.mrb[0].mxu0
  %v268 = vadd.f32 0.0, %v267
  %v269 = vpop.f32.mrb[0].mxu0
  %270 = vmatprep.mubr.bf16.mxu0 0
  %271 = vmatmul.mubr.bf16.gmra.mrb[0].mxu0 %v61
  %v272 = vpop.f32.mrb[0].mxu0
  %v273 = vadd.f32 0.0, %v272
  %v274 = vpop.f32.mrb[0].mxu0
  %v275 = vpop.f32.mrb[0].mxu0
  %v276 = vadd.f32 0.0, %v275
  %v277 = vpop.f32.mrb[0].mxu0
  %278 = vmatprep.mubr.bf16.mxu0 0
  %279 = vmatmul.mubr.bf16.gmra.mrb[0].mxu0 %v62
  %v280 = vpop.f32.mrb[0].mxu0
  %v281 = vadd.f32 0.0, %v280
  %v282 = vpop.f32.mrb[0].mxu0
  %v283 = vpop.f32.mrb[0].mxu0
  %v284 = vadd.f32 0.0, %v283
  %v285 = vpop.f32.mrb[0].mxu0
  %286 = vmatprep.mubr.bf16.mxu0 0
  %287 = vmatmul.mubr.bf16.gmra.mrb[0].mxu0 %v63
  %v288 = vpop.f32.mrb[0].mxu0
  %v289 = vadd.f32 0.0, %v288
  %v290 = vpop.f32.mrb[0].mxu0
  %v291 = vpop.f32.mrb[0].mxu0
  %v292 = vadd.f32 0.0, %v291
  %v293 = vpop.f32.mrb[0].mxu0
  %294 = vmatprep.mubr.bf16.mxu0 0
  %295 = vmatmul.mubr.bf16.gmra.mrb[0].mxu0 %v64
  %v296 = vpop.f32.mrb[0].mxu0
  %v297 = vadd.f32 0.0, %v296
  %v298 = vpop.f32.mrb[0].mxu0
  %v299 = vpop.f32.mrb[0].mxu0
  %v300 = vadd.f32 0.0, %v299
  %v301 = vpop.f32.mrb[0].mxu0
  %302 = vmatprep.mubr.bf16.mxu0 0
  %303 = vmatmul.mubr.bf16.gmra.mrb[0].mxu0 %v65
  %v304 = vpop.f32.mrb[0].mxu0
  %v305 = vadd.f32 0.0, %v304
  %v306 = vpop.f32.mrb[0].mxu0
  %v307 = vpop.f32.mrb[0].mxu0
  %v308 = vadd.f32 0.0, %v307
  %v309 = vpop.f32.mrb[0].mxu0
  %310 = vdwg.mxu0
  %v311 = vmax.f32 %v249, 0.0
  %v312 = vmax.f32 %v252, 0.0
  %v313 = vmax.f32 %v257, 0.0
  %v314 = vmax.f32 %v260, 0.0
  %v315 = vmax.f32 %v265, 0.0
  %v316 = vmax.f32 %v268, 0.0
  %v317 = vmax.f32 %v273, 0.0
  %v318 = vmax.f32 %v276, 0.0
  %v319 = vmax.f32 %v281, 0.0
  %v320 = vmax.f32 %v284, 0.0
  %v321 = vmax.f32 %v289, 0.0
  %v322 = vmax.f32 %v292, 0.0
  %v323 = vmax.f32 %v297, 0.0
  %v324 = vmax.f32 %v300, 0.0
  %v325 = vmax.f32 %v305, 0.0
  %v326 = vmax.f32 %v308, 0.0
  %v327 = vpack.c.bf16 %v312, %v311
  %v328 = vpack.c.bf16 %v314, %v313
  %v329 = vpack.c.bf16 %v316, %v315
  %v330 = vpack.c.bf16 %v318, %v317
  %v331 = vpack.c.bf16 %v320, %v319
  %v332 = vpack.c.bf16 %v322, %v321
  %v333 = vpack.c.bf16 %v324, %v323
  %v334 = vpack.c.bf16 %v326, %v325
  %vm335 = vcmask 261120
  %v337 = vsel %vm335, %v327, 0
  %v340 = vsel %vm335, %v328, 0
  %v343 = vsel %vm335, %v329, 0
  %v346 = vsel %vm335, %v330, 0
  %v349 = vsel %vm335, %v331, 0
  %v352 = vsel %vm335, %v332, 0
  %v355 = vsel %vm335, %v333, 0
  %v358 = vsel %vm335, %v334, 0
  %360 = vmatprep.subr.bf16.mxu0 0
  %361 = vmatpush1.bf16.msra.mxu0 %v82
  %362 = vmatprep.subr.bf16.mxu0 0
  %363 = vmatpush1.bf16.msra.mxu0 %v83
  %364 = vmatprep.subr.bf16.mxu0 0
  %365 = vmatpush1.bf16.msra.mxu0 0
  %366 = vmatprep.subr.bf16.mxu0 0
  %367 = vmatpush1.bf16.msra.mxu0 0
  %368 = vmatprep.subr.bf16.mxu0 0
  %369 = vmatpush1.bf16.msra.mxu0 0
  %370 = vmatprep.subr.bf16.mxu0 0
  %371 = vmatpush1.bf16.msra.mxu0 0
  %372 = vmatprep.subr.bf16.mxu0 0
  %373 = vmatpush1.bf16.msra.mxu0 0
  %374 = vmatprep.subr.bf16.mxu0 0
  %375 = vmatpush1.bf16.msra.mxu0 0
  %376 = vmatprep.subr.bf16.mxu0 0
  %377 = vmatpush1.bf16.msra.mxu0 0
  %378 = vmatprep.subr.bf16.mxu0 0
  %379 = vmatpush1.bf16.msra.mxu0 0
  %380 = vmatprep.subr.bf16.mxu0 0
  %381 = vmatpush1.bf16.msra.mxu0 0
  %382 = vmatprep.subr.bf16.mxu0 0
  %383 = vmatpush1.bf16.msra.mxu0 0
  %384 = vmatprep.subr.bf16.mxu0 0
  %385 = vmatpush1.bf16.msra.mxu0 0
  %386 = vmatprep.subr.bf16.mxu0 0
  %387 = vmatpush1.bf16.msra.mxu0 0
  %388 = vmatprep.subr.bf16.mxu0 0
  %389 = vmatpush1.bf16.msra.mxu0 0
  %390 = vmatprep.subr.bf16.mxu0 0
  %391 = vmatpush1.bf16.msra.mxu0 0
  %392 = vmatprep.mubr.bf16.mxu0 0
  %393 = vmatmul.mubr.bf16.gmra.mrb[0].mxu0 %v337
  %v394 = vpop.f32.mrb[0].mxu0
  %v395 = vadd.f32 0.0, %v394
  %v396 = vpop.f32.mrb[0].mxu0
  %v397 = vpop.f32.mrb[0].mxu0
  %v398 = vadd.f32 0.0, %v397
  %v399 = vpop.f32.mrb[0].mxu0
  %400 = vmatprep.mubr.bf16.mxu0 0
  %401 = vmatmul.mubr.bf16.gmra.mrb[0].mxu0 %v340
  %v402 = vpop.f32.mrb[0].mxu0
  %v403 = vadd.f32 0.0, %v402
  %v404 = vpop.f32.mrb[0].mxu0
  %v405 = vpop.f32.mrb[0].mxu0
  %v406 = vadd.f32 0.0, %v405
  %v407 = vpop.f32.mrb[0].mxu0
  %408 = vmatprep.mubr.bf16.mxu0 0
  %409 = vmatmul.mubr.bf16.gmra.mrb[0].mxu0 %v343
  %v410 = vpop.f32.mrb[0].mxu0
  %v411 = vadd.f32 0.0, %v410
  %v412 = vpop.f32.mrb[0].mxu0
  %v413 = vpop.f32.mrb[0].mxu0
  %v414 = vadd.f32 0.0, %v413
  %v415 = vpop.f32.mrb[0].mxu0
  %416 = vmatprep.mubr.bf16.mxu0 0
  %417 = vmatmul.mubr.bf16.gmra.mrb[0].mxu0 %v346
  %v418 = vpop.f32.mrb[0].mxu0
  %v419 = vadd.f32 0.0, %v418
  %v420 = vpop.f32.mrb[0].mxu0
  %v421 = vpop.f32.mrb[0].mxu0
  %v422 = vadd.f32 0.0, %v421
  %v423 = vpop.f32.mrb[0].mxu0
  %424 = vmatprep.mubr.bf16.mxu0 0
  %425 = vmatmul.mubr.bf16.gmra.mrb[0].mxu0 %v349
  %v426 = vpop.f32.mrb[0].mxu0
  %v427 = vadd.f32 0.0, %v426
  %v428 = vpop.f32.mrb[0].mxu0
  %v429 = vpop.f32.mrb[0].mxu0
  %v430 = vadd.f32 0.0, %v429
  %v431 = vpop.f32.mrb[0].mxu0
  %432 = vmatprep.mubr.bf16.mxu0 0
  %433 = vmatmul.mubr.bf16.gmra.mrb[0].mxu0 %v352
  %v434 = vpop.f32.mrb[0].mxu0
  %v435 = vadd.f32 0.0, %v434
  %v436 = vpop.f32.mrb[0].mxu0
  %v437 = vpop.f32.mrb[0].mxu0
  %v438 = vadd.f32 0.0, %v437
  %v439 = vpop.f32.mrb[0].mxu0
  %440 = vmatprep.mubr.bf16.mxu0 0
  %441 = vmatmul.mubr.bf16.gmra.mrb[0].mxu0 %v355
  %v442 = vpop.f32.mrb[0].mxu0
  %v443 = vadd.f32 0.0, %v442
  %v444 = vpop.f32.mrb[0].mxu0
  %v445 = vpop.f32.mrb[0].mxu0
  %v446 = vadd.f32 0.0, %v445
  %v447 = vpop.f32.mrb[0].mxu0
  %448 = vmatprep.mubr.bf16.mxu0 0
  %449 = vmatmul.mubr.bf16.gmra.mrb[0].mxu0 %v358
  %v450 = vpop.f32.mrb[0].mxu0
  %v451 = vadd.f32 0.0, %v450
  %v452 = vpop.f32.mrb[0].mxu0
  %v453 = vpop.f32.mrb[0].mxu0
  %v454 = vadd.f32 0.0, %v453
  %v455 = vpop.f32.mrb[0].mxu0
  %456 = vdwg.mxu0
  %v457 = vpack.c.bf16 %v398, %v395
  %v458 = vpack.c.bf16 %v406, %v403
  %v459 = vpack.c.bf16 %v414, %v411
  %v460 = vpack.c.bf16 %v422, %v419
  %v461 = vpack.c.bf16 %v430, %v427
  %v462 = vpack.c.bf16 %v438, %v435
  %v463 = vpack.c.bf16 %v446, %v443
  %v464 = vpack.c.bf16 %v454, %v451
  %465 = vmatprep.subr.bf16.mxu0 0
  %466 = vmatpush1.bf16.msra.mxu0 %v457
  %467 = vmatprep.subr.bf16.mxu0 0
  %468 = vmatpush1.bf16.msra.mxu0 %v458
  %469 = vmatprep.subr.bf16.mxu0 0
  %470 = vmatpush1.bf16.msra.mxu0 %v459
  %471 = vmatprep.subr.bf16.mxu0 0
  %472 = vmatpush1.bf16.msra.mxu0 %v460
  %473 = vmatprep.subr.bf16.mxu0 0
  %474 = vmatpush1.bf16.msra.mxu0 %v461
  %475 = vmatprep.subr.bf16.mxu0 0
  %476 = vmatpush1.bf16.msra.mxu0 %v462
  %477 = vmatprep.subr.bf16.mxu0 0
  %478 = vmatpush1.bf16.msra.mxu0 %v463
  %479 = vmatprep.subr.bf16.mxu0 0
  %480 = vmatpush1.bf16.msra.mxu0 %v464
  %481 = vmatprep.subr.bf16.mxu0 0
  %482 = vmatpush1.bf16.msra.mxu0 0
  %483 = vmatprep.subr.bf16.mxu0 0
  %484 = vmatpush1.bf16.msra.mxu0 0
  %485 = vmatprep.subr.bf16.mxu0 0
  %486 = vmatpush1.bf16.msra.mxu0 0
  %487 = vmatprep.subr.bf16.mxu0 0
  %488 = vmatpush1.bf16.msra.mxu0 0
  %489 = vmatprep.subr.bf16.mxu0 0
  %490 = vmatpush1.bf16.msra.mxu0 0
  %491 = vmatprep.subr.bf16.mxu0 0
  %492 = vmatpush1.bf16.msra.mxu0 0
  %493 = vmatprep.subr.bf16.mxu0 0
  %494 = vmatpush1.bf16.msra.mxu0 0
  %495 = vmatprep.subr.bf16.mxu0 0
  %496 = vmatpush1.bf16.msra.mxu0 0
  %497 = vmatprep.mubr.bf16.mxu0 0
  %498 = vmatmul.mubr.bf16.gmra.mrb[0].mxu0 %v58
  %v499 = vpop.f32.mrb[0].mxu0
  %v500 = vadd.f32 0.0, %v499
  %v501 = vpop.f32.mrb[0].mxu0
  %v502 = vpop.f32.mrb[0].mxu0
  %v503 = vadd.f32 0.0, %v502
  %v504 = vpop.f32.mrb[0].mxu0
  %505 = vmatprep.mubr.bf16.mxu0 0
  %506 = vmatmul.mubr.bf16.gmra.mrb[0].mxu0 %v59
  %v507 = vpop.f32.mrb[0].mxu0
  %v508 = vadd.f32 0.0, %v507
  %v509 = vpop.f32.mrb[0].mxu0
  %v510 = vpop.f32.mrb[0].mxu0
  %v511 = vadd.f32 0.0, %v510
  %v512 = vpop.f32.mrb[0].mxu0
  %513 = vmatprep.mubr.bf16.mxu0 0
  %514 = vmatmul.mubr.bf16.gmra.mrb[0].mxu0 %v60
  %v515 = vpop.f32.mrb[0].mxu0
  %v516 = vadd.f32 0.0, %v515
  %v517 = vpop.f32.mrb[0].mxu0
  %v518 = vpop.f32.mrb[0].mxu0
  %v519 = vadd.f32 0.0, %v518
  %v520 = vpop.f32.mrb[0].mxu0
  %521 = vmatprep.mubr.bf16.mxu0 0
  %522 = vmatmul.mubr.bf16.gmra.mrb[0].mxu0 %v61
  %v523 = vpop.f32.mrb[0].mxu0
  %v524 = vadd.f32 0.0, %v523
  %v525 = vpop.f32.mrb[0].mxu0
  %v526 = vpop.f32.mrb[0].mxu0
  %v527 = vadd.f32 0.0, %v526
  %v528 = vpop.f32.mrb[0].mxu0
  %529 = vmatprep.mubr.bf16.mxu0 0
  %530 = vmatmul.mubr.bf16.gmra.mrb[0].mxu0 %v62
  %v531 = vpop.f32.mrb[0].mxu0
  %v532 = vadd.f32 0.0, %v531
  %v533 = vpop.f32.mrb[0].mxu0
  %v534 = vpop.f32.mrb[0].mxu0
  %v535 = vadd.f32 0.0, %v534
  %v536 = vpop.f32.mrb[0].mxu0
  %537 = vmatprep.mubr.bf16.mxu0 0
  %538 = vmatmul.mubr.bf16.gmra.mrb[0].mxu0 %v63
  %v539 = vpop.f32.mrb[0].mxu0
  %v540 = vadd.f32 0.0, %v539
  %v541 = vpop.f32.mrb[0].mxu0
  %v542 = vpop.f32.mrb[0].mxu0
  %v543 = vadd.f32 0.0, %v542
  %v544 = vpop.f32.mrb[0].mxu0
  %545 = vmatprep.mubr.bf16.mxu0 0
  %546 = vmatmul.mubr.bf16.gmra.mrb[0].mxu0 %v64
  %v547 = vpop.f32.mrb[0].mxu0
  %v548 = vadd.f32 0.0, %v547
  %v549 = vpop.f32.mrb[0].mxu0
  %v550 = vpop.f32.mrb[0].mxu0
  %v551 = vadd.f32 0.0, %v550
  %v552 = vpop.f32.mrb[0].mxu0
  %553 = vmatprep.mubr.bf16.mxu0 0
  %554 = vmatmul.mubr.bf16.gmra.mrb[0].mxu0 %v65
  %v555 = vpop.f32.mrb[0].mxu0
  %v556 = vadd.f32 0.0, %v555
  %v557 = vpop.f32.mrb[0].mxu0
  %v558 = vpop.f32.mrb[0].mxu0
  %v559 = vadd.f32 0.0, %v558
  %v560 = vpop.f32.mrb[0].mxu0
  %561 = vdwg.mxu0
  %vm562 = vcmask 130048
  %563 = vst.msk [vmem:[%s4] sm:$0xff] %vm562, %v500
  %564 = vst.msk [vmem:[%s4 + $0x8] sm:$0xff] %vm562, %v503
  %565 = vst.msk [vmem:[%s4 + $0x10] sm:$0xff] %vm562, %v508
  %566 = vst.msk [vmem:[%s4 + $0x18] sm:$0xff] %vm562, %v511
  %567 = vst.msk [vmem:[%s4 + $0x20] sm:$0xff] %vm562, %v516
  %568 = vst.msk [vmem:[%s4 + $0x28] sm:$0xff] %vm562, %v519
  %569 = vst.msk [vmem:[%s4 + $0x30] sm:$0xff] %vm562, %v524
  %570 = vst.msk [vmem:[%s4 + $0x38] sm:$0xff] %vm562, %v527
  %571 = vst.msk [vmem:[%s4 + $0x40] sm:$0xff] %vm562, %v532
  %572 = vst.msk [vmem:[%s4 + $0x48] sm:$0xff] %vm562, %v535
  %573 = vst.msk [vmem:[%s4 + $0x50] sm:$0xff] %vm562, %v540
  %574 = vst.msk [vmem:[%s4 + $0x58] sm:$0xff] %vm562, %v543
  %575 = vst.msk [vmem:[%s4 + $0x60] sm:$0xff] %vm562, %v548
  %576 = vst.msk [vmem:[%s4 + $0x68] sm:$0xff] %vm562, %v551
  %577 = vst.msk [vmem:[%s4 + $0x70] sm:$0xff] %vm562, %v556
  %578 = vst.msk [vmem:[%s4 + $0x78] sm:$0xff] %vm562, %v559
  // Predicated region
  $region18: #{gcn_forward.1} parent=0 // pred_check
    _
  $region19: #{gcn_forward.1} parent=0 // pred_check_branch
    %580 = sbr.rel (0) target = $region21
  $region20: #{gcn_forward.1} parent=0 // pred_region
    _
  $region21: #{gcn_forward.1} parent=0 // pred_fallthru
    _
  // Predicated region
  $region22: #{gcn_forward.1} parent=0 // pred_check
    _
  $region23: #{gcn_forward.1} parent=0 // pred_check_branch
    %582 = sbr.rel (0) target = $region25
  $region24: #{gcn_forward.1} parent=0 // pred_region
    _
  $region25: #{gcn_forward.1} parent=0 // pred_fallthru
    _

</llo_original>
